<compile_context>
chip_gen: v6e
topology: v6e:2x2x1
jax: 0.10.0
libtpu: 0.0.40
codegen_flags: <defaults>
</compile_context>

<pallas_src>
import functools

import jax
import jax.numpy as jnp
from jax import lax
from jax.experimental import pallas as pl
from jax.experimental.pallas import tpu as pltpu

LANES = 128
BLOCK_ROWS_MAX = 8192        # (8192, 128) f32 block = 4 MiB per input per buffer
PAD_LOGIT = -100.0           # sigmoid(-100)~=0 (f32 subnormal), BCE(-100, 0) == 0


def _round_up(x, m):
    return (x + m - 1) // m * m


def _num_tensorcores():
    """Best-effort TensorCores-per-device count (for megacore grid sharding)."""
    try:
        kind = jax.devices()[0].device_kind.lower()
    except Exception:
        return 1
    # Single-TC-per-device chips: v2/v3 (one core per JAX device) and the
    # "lite" parts v5e / v6e (Trillium).
    if any(s in kind for s in ("lite", "v5e", "v6e", "trillium", "v2", "v3")):
        return 1
    # v4 / v5p (megacore) and v7x expose 2 TensorCores per device.
    return 2


def _bce_dice_kernel(p_ref, t_ref, acc_ref, *, block_rows, blocks_per_core,
                     num_blocks, rows, ragged, gate_phantom):
    c = pl.program_id(0)   # TensorCore split axis ("parallel")
    i = pl.program_id(1)   # reduction over row-blocks ("arbitrary")

    @pl.when(i == 0)
    def _init():
        acc_ref[...] = jnp.zeros_like(acc_ref)

    blk = c * blocks_per_core + i   # logical (unclamped) block index

    def _accumulate():
        x = p_ref[...].astype(jnp.float32)
        t = t_ref[...].astype(jnp.float32)

        if ragged:
            # Only emitted when the last row-block is statically partial:
            # a row-only mask (iota + compare + 2 selects), applied BEFORE
            # the transcendentals so garbage OOB rows cannot poison the sums.
            # Masked logits become PAD_LOGIT -> contribute ~0 to every sum.
            rows_remaining = rows - blk * block_rows          # int32 scalar
            row_ids = lax.broadcasted_iota(jnp.int32, (block_rows, 1), 0)
            valid = row_ids < rows_remaining
            x = jnp.where(valid, x, PAD_LOGIT)
            t = jnp.where(valid, t, 0.0)

        # Shared exponential between sigmoid and the stable BCE log term:
        #   e = exp(-|x|);  sigmoid(x) = 1/(1+e) if x>=0 else e/(1+e)
        #   BCE = max(x,0) - x*t + log1p(exp(-|x|)) = max(x,0) - x*t + log(1+e)
        e = jnp.exp(-jnp.abs(x))                              # EUP
        d = 1.0 + e
        inv_d = 1.0 / d          # exact divide (approx recip brushes 1e-5 tol)
        p = jnp.where(x >= 0.0, inv_d, e * inv_d)             # sigmoid(x)
        bce = jnp.maximum(x, 0.0) - x * t + jnp.log(d)        # EUP

        def fold(v):
            # (block_rows, 128) -> (8, 128): tile-aligned VPU adds; the
            # cross-lane reduction is deferred to the tiny wrapper sum.
            # TODO(synk): on v7x, if VALU is still the binding slot, this fold
            # could be moved onto the idle MXU via a ones-vector contraction.
            return jnp.sum(v.reshape(block_rows // 8, 8, LANES), axis=0)

        acc_ref[0, 0] += fold(p * t)      # Dice intersection
        acc_ref[0, 1] += fold(p + t)      # Dice denominator (combined sum)
        acc_ref[0, 2] += fold(bce)        # BCE sum

    if gate_phantom:
        # Clamped/duplicated block on the multi-core split: skip all compute.
        pl.when(blk < num_blocks)(_accumulate)
    else:
        _accumulate()


def bce_dice_loss(preds, targets, smooth=1e-06):
    """BCEWithLogits(mean) + soft Dice loss (preds are raw logits)."""
    n = preds.size
    p_flat = jnp.reshape(preds, (-1,))
    t_flat = jnp.reshape(targets, (-1,))

    # Tail-pad (<1024 elements, rare) so the flat array reshapes to a
    # (rows multiple-of-8, 128) grid with NO in-kernel lane/sublane masking.
    # Pad logits of -100 give sigmoid ~ 0 and BCE == 0, so padded elements
    # contribute nothing to any of the three sums.
    n_pad = _round_up(n, 8 * LANES)
    if n_pad != n:
        pad = n_pad - n
        p_flat = jnp.pad(p_flat, (0, pad), constant_values=PAD_LOGIT)
        t_flat = jnp.pad(t_flat, (0, pad), constant_values=0)

    rows = n_pad // LANES
    p2d = p_flat.reshape(rows, LANES)
    t2d = t_flat.reshape(rows, LANES)

    block_rows = min(BLOCK_ROWS_MAX, rows)          # always a multiple of 8
    num_blocks = pl.cdiv(rows, block_rows)
    num_cores = max(1, min(_num_tensorcores(), num_blocks))
    blocks_per_core = pl.cdiv(num_blocks, num_cores)
    has_phantom = num_cores * blocks_per_core != num_blocks
    ragged = (rows % block_rows) != 0               # last row-block partial?

    def in_map(c, i):
        blk = c * blocks_per_core + i
        if has_phantom:
            # A core that ran out of real blocks re-reads the last valid block;
            # its compute/accumulation is skipped inside the kernel.
            blk = jnp.minimum(blk, num_blocks - 1)
        return (blk, 0)

    kernel = functools.partial(
        _bce_dice_kernel,
        block_rows=block_rows,
        blocks_per_core=blocks_per_core,
        num_blocks=num_blocks,
        rows=rows,
        ragged=ragged,
        gate_phantom=has_phantom,
    )

    in_bytes = p2d.size * p2d.dtype.itemsize + t2d.size * t2d.dtype.itemsize
    out_bytes = num_cores * 3 * 8 * LANES * 4
    cost = pl.CostEstimate(
        flops=15 * n,
        transcendentals=2 * n,
        bytes_accessed=int(in_bytes + out_bytes),
    )

    partials = pl.pallas_call(
        kernel,
        out_shape=jax.ShapeDtypeStruct((num_cores, 3, 8, LANES), jnp.float32),
        grid_spec=pltpu.PrefetchScalarGridSpec(
            num_scalar_prefetch=0,
            grid=(num_cores, blocks_per_core),
            in_specs=[
                pl.BlockSpec((block_rows, LANES), in_map),
                pl.BlockSpec((block_rows, LANES), in_map),
            ],
            out_specs=pl.BlockSpec((1, 3, 8, LANES),
                                   lambda c, i: (c, 0, 0, 0)),
        ),
        compiler_params=pltpu.CompilerParams(
            dimension_semantics=("parallel", "arbitrary"),
            vmem_limit_bytes=40 * 1024 * 1024,
        ),
        cost_estimate=cost,
    )(p2d, t2d)

    # Final tiny reduction of per-core, per-lane partial sums (a few KiB).
    sums = jnp.sum(partials, axis=(0, 2, 3))  # [sum(p*t), sum(p+t), sum(bce)]
    inter, p_plus_t, bce_sum = sums[0], sums[1], sums[2]
    dice = (2.0 * inter + smooth) / (p_plus_t + smooth)
    bce_mean = bce_sum / jnp.float32(n)
    return bce_mean + (1.0 - dice)


def bce_dice_loss_ref(preds, targets, smooth=1e-06):
    x = preds.astype(jnp.float32)
    t = targets.astype(jnp.float32)
    p = jax.nn.sigmoid(x)
    inter = jnp.sum(p * t)
    dice = (2.0 * inter + smooth) / (jnp.sum(p) + jnp.sum(t) + smooth)
    bce = jnp.mean(jnp.maximum(x, 0.0) - x * t + jnp.log1p(jnp.exp(-jnp.abs(x))))
    return bce + (1.0 - dice)


if __name__ == "__main__":
    key = jax.random.PRNGKey(0)
    k1, k2 = jax.random.split(key)
    # NCHW-shaped segmentation logits / binary masks, as the U-Net would emit.
    preds = jax.random.normal(k1, (2, 4, 16, 16), dtype=jnp.float32)
    targets = (jax.random.uniform(k2, (2, 4, 16, 16)) > 0.5).astype(jnp.float32)

    loss = jax.block_until_ready(bce_dice_loss(preds, targets))
    ref = jax.block_until_ready(bce_dice_loss_ref(preds, targets))

    assert jnp.allclose(loss, ref, atol=1e-5, rtol=1e-5), (loss, ref)
    print("KERNEL_OK")
</pallas_src>

<mosaic_0001>
module attributes {stable_mosaic.version = 11 : i64} {
  func.func @_bce_dice_kernel(%arg0: i32, %arg1: i32, %arg2: memref<16x128xf32, #tpu.memory_space<vmem>>, %arg3: memref<16x128xf32, #tpu.memory_space<vmem>>, %arg4: memref<1x3x8x128xf32, #tpu.memory_space<vmem>>) attributes {dimension_semantics = [#tpu.dimension_semantics<parallel>, #tpu.dimension_semantics<arbitrary>], iteration_bounds = array<i64: 1, 1>, scalar_prefetch = 0 : i64, scratch_operands = 0 : i64, tpu.core_type = #tpu.core_type<tc>, window_params = [{transform_indices = @transform_0, window_bounds = array<i64: 16, 128>}, {transform_indices = @transform_1, window_bounds = array<i64: 16, 128>}, {transform_indices = @transform_2, window_bounds = array<i64: 1, 3, 8, 128>}]} {
    %c0_i32 = arith.constant 0 : i32
    %0 = arith.cmpi eq, %arg1, %c0_i32 : i32
    %1 = arith.extui %0 : i1 to i32
    %c0_i32_0 = arith.constant 0 : i32
    %2 = arith.cmpi ne, %1, %c0_i32_0 : i32
    scf.if %2 {
      %cst_33 = arith.constant 0.000000e+00 : f32
      %49 = vector.broadcast %cst_33 : f32 to vector<1x3x8x128xf32>
      %c0_34 = arith.constant 0 : index
      %c0_35 = arith.constant 0 : index
      %c0_36 = arith.constant 0 : index
      %c0_37 = arith.constant 0 : index
      %50 = vector.load %arg4[%c0_34, %c0_35, %c0_36, %c0_37] : memref<1x3x8x128xf32, #tpu.memory_space<vmem>>, vector<1x3x8x128xf32>
      tpu.vector_store %arg4[%c0_34, %c0_35, %c0_36, %c0_37], %49 {strides = array<i32>} : memref<1x3x8x128xf32, #tpu.memory_space<vmem>>, vector<1x3x8x128xf32>,
    } else {
    }
    %c0 = arith.constant 0 : index
    %c0_1 = arith.constant 0 : index
    %3 = vector.load %arg2[%c0, %c0_1] : memref<16x128xf32, #tpu.memory_space<vmem>>, vector<16x128xf32>
    %c0_2 = arith.constant 0 : index
    %c0_3 = arith.constant 0 : index
    %4 = vector.load %arg3[%c0_2, %c0_3] : memref<16x128xf32, #tpu.memory_space<vmem>>, vector<16x128xf32>
    %5 = math.absf %3 : vector<16x128xf32>
    %cst = arith.constant 0.000000e+00 : f32
    %6 = vector.broadcast %cst : f32 to vector<16x128xf32>
    %7 = arith.subf %6, %5 : vector<16x128xf32>
    %8 = math.exp %7 : vector<16x128xf32>
    %cst_4 = arith.constant 1.000000e+00 : f32
    %9 = vector.broadcast %cst_4 : f32 to vector<16x128xf32>
    %10 = arith.addf %9, %8 : vector<16x128xf32>
    %cst_5 = arith.constant 1.000000e+00 : f32
    %11 = vector.broadcast %cst_5 : f32 to vector<16x128xf32>
    %12 = arith.divf %11, %10 : vector<16x128xf32>
    %cst_6 = arith.constant 0.000000e+00 : f32
    %13 = vector.broadcast %cst_6 : f32 to vector<16x128xf32>
    %14 = arith.cmpf oge, %3, %13 : vector<16x128xf32>
    %15 = arith.mulf %8, %12 : vector<16x128xf32>
    %16 = arith.select %14, %12, %15 : vector<16x128xi1>, vector<16x128xf32>
    %cst_7 = arith.constant 0.000000e+00 : f32
    %17 = vector.broadcast %cst_7 : f32 to vector<16x128xf32>
    %18 = arith.maximumf %3, %17 : vector<16x128xf32>
    %19 = arith.mulf %3, %4 : vector<16x128xf32>
    %20 = arith.subf %18, %19 : vector<16x128xf32>
    %21 = math.log %10 : vector<16x128xf32>
    %22 = arith.addf %20, %21 : vector<16x128xf32>
    %c0_8 = arith.constant 0 : index
    %c0_9 = arith.constant 0 : index
    %c0_10 = arith.constant 0 : index
    %c0_11 = arith.constant 0 : index
    %23 = vector.load %arg4[%c0_8, %c0_9, %c0_10, %c0_11] : memref<1x3x8x128xf32, #tpu.memory_space<vmem>>, vector<1x1x8x128xf32>
    %24 = vector.shape_cast %23 : vector<1x1x8x128xf32> to vector<8x128xf32>
    %25 = arith.mulf %16, %4 : vector<16x128xf32>
    %26 = vector.shape_cast %25 : vector<16x128xf32> to vector<2x8x128xf32>
    %cst_12 = arith.constant dense<0.000000e+00> : vector<8x128xf32>
    %27 = vector.multi_reduction <add>, %26, %cst_12 [0] : vector<2x8x128xf32> to vector<8x128xf32>
    %28 = arith.addf %24, %27 : vector<8x128xf32>
    %c0_13 = arith.constant 0 : index
    %c0_14 = arith.constant 0 : index
    %c0_15 = arith.constant 0 : index
    %c0_16 = arith.constant 0 : index
    %29 = vector.load %arg4[%c0_13, %c0_14, %c0_15, %c0_16] : memref<1x3x8x128xf32, #tpu.memory_space<vmem>>, vector<1x1x8x128xf32>
    %30 = vector.shape_cast %29 : vector<1x1x8x128xf32> to vector<8x128xf32>
    %31 = vector.shape_cast %28 : vector<8x128xf32> to vector<1x1x8x128xf32>
    tpu.vector_store %arg4[%c0_13, %c0_14, %c0_15, %c0_16], %31 {strides = array<i32>} : memref<1x3x8x128xf32, #tpu.memory_space<vmem>>, vector<1x1x8x128xf32>,
    %c0_17 = arith.constant 0 : index
    %c1 = arith.constant 1 : index
    %c0_18 = arith.constant 0 : index
    %c0_19 = arith.constant 0 : index
    %32 = vector.load %arg4[%c0_17, %c1, %c0_18, %c0_19] : memref<1x3x8x128xf32, #tpu.memory_space<vmem>>, vector<1x1x8x128xf32>
    %33 = vector.shape_cast %32 : vector<1x1x8x128xf32> to vector<8x128xf32>
    %34 = arith.addf %16, %4 : vector<16x128xf32>
    %35 = vector.shape_cast %34 : vector<16x128xf32> to vector<2x8x128xf32>
    %cst_20 = arith.constant dense<0.000000e+00> : vector<8x128xf32>
    %36 = vector.multi_reduction <add>, %35, %cst_20 [0] : vector<2x8x128xf32> to vector<8x128xf32>
    %37 = arith.addf %33, %36 : vector<8x128xf32>
    %c0_21 = arith.constant 0 : index
    %c1_22 = arith.constant 1 : index
    %c0_23 = arith.constant 0 : index
    %c0_24 = arith.constant 0 : index
    %38 = vector.load %arg4[%c0_21, %c1_22, %c0_23, %c0_24] : memref<1x3x8x128xf32, #tpu.memory_space<vmem>>, vector<1x1x8x128xf32>
    %39 = vector.shape_cast %38 : vector<1x1x8x128xf32> to vector<8x128xf32>
    %40 = vector.shape_cast %37 : vector<8x128xf32> to vector<1x1x8x128xf32>
    tpu.vector_store %arg4[%c0_21, %c1_22, %c0_23, %c0_24], %40 {strides = array<i32>} : memref<1x3x8x128xf32, #tpu.memory_space<vmem>>, vector<1x1x8x128xf32>,
    %c0_25 = arith.constant 0 : index
    %c2 = arith.constant 2 : index
    %c0_26 = arith.constant 0 : index
    %c0_27 = arith.constant 0 : index
    %41 = vector.load %arg4[%c0_25, %c2, %c0_26, %c0_27] : memref<1x3x8x128xf32, #tpu.memory_space<vmem>>, vector<1x1x8x128xf32>
    %42 = vector.shape_cast %41 : vector<1x1x8x128xf32> to vector<8x128xf32>
    %43 = vector.shape_cast %22 : vector<16x128xf32> to vector<2x8x128xf32>
    %cst_28 = arith.constant dense<0.000000e+00> : vector<8x128xf32>
    %44 = vector.multi_reduction <add>, %43, %cst_28 [0] : vector<2x8x128xf32> to vector<8x128xf32>
    %45 = arith.addf %42, %44 : vector<8x128xf32>
    %c0_29 = arith.constant 0 : index
    %c2_30 = arith.constant 2 : index
    %c0_31 = arith.constant 0 : index
    %c0_32 = arith.constant 0 : index
    %46 = vector.load %arg4[%c0_29, %c2_30, %c0_31, %c0_32] : memref<1x3x8x128xf32, #tpu.memory_space<vmem>>, vector<1x1x8x128xf32>
    %47 = vector.shape_cast %46 : vector<1x1x8x128xf32> to vector<8x128xf32>
    %48 = vector.shape_cast %45 : vector<8x128xf32> to vector<1x1x8x128xf32>
    tpu.vector_store %arg4[%c0_29, %c2_30, %c0_31, %c0_32], %48 {strides = array<i32>} : memref<1x3x8x128xf32, #tpu.memory_space<vmem>>, vector<1x1x8x128xf32>,
    return
  }
  func.func @transform_0(%arg0: i32, %arg1: i32) -> (i32, i32) {
    %c1_i32 = arith.constant 1 : i32
    %0 = arith.muli %arg0, %c1_i32 : i32
    %1 = arith.addi %0, %arg1 : i32
    %c0_i32 = arith.constant 0 : i32
    %c0_i32_0 = arith.constant 0 : i32
    return %1, %c0_i32 : i32, i32
  }
  func.func @transform_1(%arg0: i32, %arg1: i32) -> (i32, i32) {
    %c1_i32 = arith.constant 1 : i32
    %0 = arith.muli %arg0, %c1_i32 : i32
    %1 = arith.addi %0, %arg1 : i32
    %c0_i32 = arith.constant 0 : i32
    %c0_i32_0 = arith.constant 0 : i32
    return %1, %c0_i32 : i32, i32
  }
  func.func @transform_2(%arg0: i32, %arg1: i32) -> (i32, i32, i32, i32) {
    %c0_i32 = arith.constant 0 : i32
    %c0_i32_0 = arith.constant 0 : i32
    %c0_i32_1 = arith.constant 0 : i32
    %c0_i32_2 = arith.constant 0 : i32
    return %arg0, %c0_i32, %c0_i32_0, %c0_i32_1 : i32, i32, i32, i32
  }
}

</mosaic_0001>

<llo_original>
// kernel: tpu_custom_call.1
$region0: #{tpu_custom_call.1}
  #allocation0 [shape = 'u32[]', space=smem, size = 0x4, offset = 0x4, fixed_abs, tag = 'smem constant byte address 0x4 - core index']
  #allocation1 [shape = 'u32[144,128]{1,0:T(1,128)}', space=vmem, size = 0x12000, scoped, tag = 'internal scratch']
  %s0 = inlined_call_operand.hbm [shape: f32[16,128], index: 0, kind: input, shape index: {}]
  %s1 = inlined_call_operand.hbm [shape: f32[16,128], index: 1, kind: input, shape index: {}]
  %s2 = inlined_call_operand.hbm [shape: f32[1,3,8,128], index: 2, kind: output, shape index: {}]
  %s3 = sld [smem:[#allocation0]]
  $region30: #{tpu_custom_call.1} parent=0
    _
  %s5 = ssub.s32 1, %s3
  %s6 = scalar_select 0, %s5, %s3
  $region1: #{tpu_custom_call.1} parent=0
    #allocation2 [shape = 'u8[8192]{0}', space=vmem, size = 0x2000, scoped, tag = 'input window, operand 0, single buffered']
    #allocation3 [shape = 's32[1]{0}', space=sflag, size = 0x4, scoped, tag = 'scoped memory for tpu_custom_call.1']
    #allocation4 [shape = 's32[1]{0}', space=sflag, size = 0x4, scoped, tag = 'scoped memory for tpu_custom_call.1']
    #allocation5 [shape = 'u8[8192]{0}', space=vmem, size = 0x2000, scoped, tag = 'input window, operand 1, single buffered']
    #allocation6 [shape = 's32[1]{0}', space=sflag, size = 0x4, scoped, tag = 'scoped memory for tpu_custom_call.1']
    #allocation7 [shape = 'u8[12288]{0}', space=vmem, size = 0x3000, scoped, tag = 'output window, operand 0, single buffered']
    %7 = vsyncpa [#allocation3], 0
    %8 = vsyncpa [#allocation6], 0
    %9 = vsyncpa [#allocation4], 0
    // Predicated region
    $region2: #{tpu_custom_call.1} parent=1 // pred_check
      _
    $region3: #{tpu_custom_call.1} parent=1 // pred_check_branch
      %11 = sbr.rel (0) target = $region5
    $region4: #{tpu_custom_call.1} parent=1 // pred_region
      %s12 = sadd.s32 0, 0
      %s13 = smul.u32 2, %s12
      %s15 = ssub.s32 256, 256
      %16 = vsyncadd [#allocation3], %s15
      %s17 = smul.addr %s13, 128
      %s18 = scalar_lea.hbm %s0, %s17
      %s19 = sshll.u32 [#allocation2], 4
      %s20 = int_to_ptr.vmem [resolvable:$true] %s19
      %25 = dma.hbm_to_vmem [thread:$0]  %s18, 256, %s20, [#allocation3], 128, 128, 8
    $region5: #{tpu_custom_call.1} parent=1 // pred_fallthru
      _
    // Predicated region
    $region6: #{tpu_custom_call.1} parent=1 // pred_check
      _
    $region7: #{tpu_custom_call.1} parent=1 // pred_check_branch
      %27 = sbr.rel (0) target = $region9
    $region8: #{tpu_custom_call.1} parent=1 // pred_region
      %s28 = sadd.s32 0, 0
      %s29 = smul.u32 2, %s28
      %s31 = ssub.s32 256, 256
      %32 = vsyncadd [#allocation6], %s31
      %s33 = smul.addr %s29, 128
      %s34 = scalar_lea.hbm %s1, %s33
      %s35 = sshll.u32 [#allocation5], 4
      %s36 = int_to_ptr.vmem [resolvable:$true] %s35
      %41 = dma.hbm_to_vmem [thread:$0]  %s34, 256, %s36, [#allocation6], 128, 128, 8
    $region9: #{tpu_custom_call.1} parent=1 // pred_fallthru
      _
    // Predicated region
    $region10: #{tpu_custom_call.1} parent=1 // pred_check
      _
    $region11: #{tpu_custom_call.1} parent=1 // pred_check_branch
      %43 = sbr.rel (0) target = $region13
    $region12: #{tpu_custom_call.1} parent=1 // pred_region
      %44 = dma.done [#allocation3], 256
    $region13: #{tpu_custom_call.1} parent=1 // pred_fallthru
      _
    // Predicated region
    $region14: #{tpu_custom_call.1} parent=1 // pred_check
      _
    $region15: #{tpu_custom_call.1} parent=1 // pred_check_branch
      %46 = sbr.rel (0) target = $region17
    $region16: #{tpu_custom_call.1} parent=1 // pred_region
      %47 = dma.done [#allocation6], 256
    $region17: #{tpu_custom_call.1} parent=1 // pred_fallthru
      _
    %s48 = sadd.s32 0, 0
    %s49 = smul.u32 2, %s48
    %s50 = sadd.s32 0, 0
    %s51 = smul.u32 2, %s50
    %p52 = scmp.eq.s32.totalorder 0, 0
    // Predicated region
    $region18: #{tpu_custom_call.1} parent=1 // pred_check
      %p53 = pneg %p52
    $region19: #{tpu_custom_call.1} parent=1 // pred_check_branch
      %55 = sbr.rel (%p53) target = $region21
    $region20: #{tpu_custom_call.1} parent=1 // pred_region
      %56 = vst [vmem:[#allocation7] sm:$0xff] 0.0
      %57 = vst [vmem:[#allocation7 + $0x8] sm:$0xff] 0.0
      %58 = vst [vmem:[#allocation7 + $0x10] sm:$0xff] 0.0
    $region21: #{tpu_custom_call.1} parent=1 // pred_fallthru
      _
    %v59 = vld [vmem:[#allocation2] sm:$0xff]
    %v60 = vld [vmem:[#allocation2 + $0x8] sm:$0xff]
    %v61 = vld [vmem:[#allocation5] sm:$0xff]
    %v62 = vld [vmem:[#allocation5 + $0x8] sm:$0xff]
    %v63 = vand.u32 2147483647, %v59
    %v64 = vand.u32 2147483647, %v60
    %v65 = vsub.f32 0.0, %v63
    %v66 = vsub.f32 0.0, %v64
    %v67 = vmul.f32 %v65, 1.442695
    %v68 = vpow.pop %v67
    %v69 = vmul.f32 %v66, 1.442695
    %v70 = vpow.pop %v69
    %v71 = vadd.f32 %v68, 1.0
    %v72 = vadd.f32 %v70, 1.0
    %v73 = vrcp.pop %v71
    %v74 = vmul.f32 1.0, %v73
    %v75 = vrcp.pop %v72
    %v76 = vmul.f32 1.0, %v75
    %vm77 = vcmp.ge.f32.partialorder %v59, 0.0
    %vm78 = vcmp.ge.f32.partialorder %v60, 0.0
    %v79 = vmul.f32 %v68, %v74
    %v80 = vmul.f32 %v70, %v76
    %v81 = vsel %vm77, %v74, %v79
    %v82 = vsel %vm78, %v76, %v80
    %v83 = vmax.f32 %v59, 0.0
    %v84 = vmax.f32 %v60, 0.0
    %v85 = vmul.f32 %v59, %v61
    %v86 = vmul.f32 %v60, %v62
    %v87 = vsub.f32 %v83, %v85
    %v88 = vsub.f32 %v84, %v86
    %v89 = vlog2.pop %v71
    %v90 = vmul.f32 %v89, 0.6931472
    %v91 = vlog2.pop %v72
    %v92 = vmul.f32 %v91, 0.6931472
    %v93 = vadd.f32 %v87, %v90
    %v94 = vadd.f32 %v88, %v92
    %v95 = vld [vmem:[#allocation7] sm:$0xff]
    %v96 = vmul.f32 %v81, %v61
    %v97 = vmul.f32 %v82, %v62
    %v98 = vadd.f32 %v96, %v97
    %v99 = vadd.f32 %v95, %v98
    %100 = vst [vmem:[#allocation7] sm:$0xff] %v99
    %s101 = scalar_lea.vmem [#allocation7], 8
    %v102 = vld [vmem:[%s101] sm:$0xff]
    %v103 = vadd.f32 %v81, %v61
    %v104 = vadd.f32 %v82, %v62
    %v105 = vadd.f32 %v103, %v104
    %v106 = vadd.f32 %v102, %v105
    %107 = vst [vmem:[%s101] sm:$0xff] %v106
    %s108 = scalar_lea.vmem [#allocation7], 16
    %v109 = vld [vmem:[%s108] sm:$0xff]
    %v110 = vadd.f32 %v93, %v94
    %v111 = vadd.f32 %v109, %v110
    %112 = vst [vmem:[%s108] sm:$0xff] %v111
    // Predicated region
    $region22: #{tpu_custom_call.1} parent=1 // pred_check
      _
    $region23: #{tpu_custom_call.1} parent=1 // pred_check_branch
      %114 = sbr.rel (0) target = $region25
    $region24: #{tpu_custom_call.1} parent=1 // pred_region
      %s116 = ssub.s32 384, 384
      %117 = vsyncadd [#allocation4], %s116
      %s118 = sshll.u32 [#allocation7], 4
      %s119 = int_to_ptr.vmem [resolvable:$true] %s118
      %124 = dma.vmem_to_hbm [thread:$0]  %s119, 384, %s2, [#allocation4], 128, 128, 8
    $region25: #{tpu_custom_call.1} parent=1 // pred_fallthru
      _
    // Predicated region
    $region26: #{tpu_custom_call.1} parent=1 // pred_check
      _
    $region27: #{tpu_custom_call.1} parent=1 // pred_check_branch
      %126 = sbr.rel (0) target = $region29
    $region28: #{tpu_custom_call.1} parent=1 // pred_region
      %127 = dma.done [#allocation4], 384
    $region29: #{tpu_custom_call.1} parent=1 // pred_fallthru
      _
    %128 = vsyncpa [#allocation3], 1
    %129 = vsyncpa [#allocation6], 1
    %130 = vsyncpa [#allocation4], 1

</llo_original>
